<compile_context>
chip_gen: v6e
topology: v6e:2x2x1
jax: 0.10.0
libtpu: 0.0.40
codegen_flags: <defaults>
</compile_context>

<pallas_src>
import jax
import jax.numpy as jnp
import numpy as np
from jax import lax
from jax.experimental import pallas as pl
from jax.experimental.pallas import tpu as pltpu

EPS_LN = 1e-6

# Model hyper-parameters
INPUT_DIM = 32
FC_LAY = [64, 64, 8]
N_OUT = FC_LAY[-1]
BATCH = 8

N_PAD = 128      # lane-dense feature width for every slab
N_VEC_ROWS = 16  # 9 used rows (ln0_g, ln0_b, b1, ln1_g, ln1_b, b2, ln2_g, ln2_b, b3), padded to 16


def backdoor_mlp_kernel(x_ref, w_ref, v_ref, out_ref):
    """Fused forward:  input-LN -> (Linear, LN, ReLU) x2 -> Linear -> LogSoftmax -> fixup.

    x_ref  : (TM, 128)     f32, columns >= INPUT_DIM are zero
    w_ref  : (3, 128, 128) f32, w_ref[i, :d_in, :d_out] = W_i^T, rest zero
    v_ref  : (16, 128)     f32, rows = [ln0_g, ln0_b, b1, ln1_g, ln1_b, b2, ln2_g, ln2_b, b3]
                            (each zero-padded past its true width)
    out_ref: (TM, 128)     f32, columns >= N_OUT hold padding (sliced off by wrapper)
    """
    f32 = jnp.float32
    x = x_ref[...]

    def layernorm(h, d, g, b):
        # Matches the custom torch LayerNorm: mean over last dim, UNBIASED std (N-1),
        # gamma*(h-mean)/(std+eps)+beta.  Padded lanes of h are zero, so the 128-lane
        # sums equal the sums over the d valid lanes; gamma/beta padding (zeros) keeps
        # the padded lanes at exactly 0 on output.
        s = jnp.sum(h, axis=-1, keepdims=True)
        ss = jnp.sum(h * h, axis=-1, keepdims=True)
        mean = s * (1.0 / d)
        var = (ss - s * mean) * (1.0 / (d - 1))          # unbiased variance
        inv = pl.reciprocal(jnp.sqrt(var) + EPS_LN, approx=True)   # EUP, free slot
        return g * (h - mean) * inv + b

    # --- input LayerNorm (fc_use_laynorm_inp = True) ---
    x = layernorm(x, INPUT_DIM, v_ref[0:1, :], v_ref[1:2, :])

    # --- layer 0: Linear -> LayerNorm -> ReLU -> Dropout(identity, eval) ---
    h = jnp.dot(x, w_ref[0], preferred_element_type=f32) + v_ref[2:3, :]
    h = layernorm(h, FC_LAY[0], v_ref[3:4, :], v_ref[4:5, :])
    h = jnp.maximum(h, 0.0)

    # --- layer 1: Linear -> LayerNorm -> ReLU -> Dropout(identity, eval) ---
    h = jnp.dot(h, w_ref[1], preferred_element_type=f32) + v_ref[5:6, :]
    h = layernorm(h, FC_LAY[1], v_ref[6:7, :], v_ref[7:8, :])
    h = jnp.maximum(h, 0.0)

    # --- layer 2: Linear -> LogSoftmax(dim=1) over the first N_OUT lanes only ---
    h = jnp.dot(h, w_ref[2], preferred_element_type=f32) + v_ref[8:9, :]
    col = lax.broadcasted_iota(jnp.int32, h.shape, 1)
    valid = col < N_OUT
    hm = jnp.where(valid, h, jnp.float32(-jnp.inf))      # exclude padded logits
    m = jnp.max(hm, axis=-1, keepdims=True)
    lse = m + jnp.log(jnp.sum(jnp.exp(hm - m), axis=-1, keepdims=True))
    h = h - lse

    # --- backdoor fixup (as in the module: applied to the final output's column 0) ---
    # if 0.5 <= round(x[i,0], 3) <= 1 then x[i,0] = 0.8   (dead for log-probs <= 0,
    # kept for faithfulness).  Reuses the `col` iota from the LogSoftmax mask.
    r = jnp.round(h * 1000.0) / 1000.0
    cond = (col == 0) & (r >= 0.5) & (r <= 1.0)
    out_ref[...] = jnp.where(cond, jnp.float32(0.8), h)
    # TODO(synk): np.save('row_index.npy', row_index) file side effect has no kernel
    # equivalent (row indices are recoverable host-side from the 0.8-marked rows).


def init_params(key, input_dim, fc_lay):
    """Deterministic init mirroring the module: W ~ U(+-sqrt(0.01/(in+out))) in torch
    (out,in) layout, b = 0, LayerNorm gamma = 1, beta = 0."""
    params = {}
    dims = [input_dim] + list(fc_lay)
    params['ln0_g'] = jnp.ones((input_dim,), jnp.float32)
    params['ln0_b'] = jnp.zeros((input_dim,), jnp.float32)
    for i in range(len(fc_lay)):
        key, sub = jax.random.split(key)
        d_in, d_out = dims[i], dims[i + 1]
        lim = float(np.sqrt(0.01 / (d_in + d_out)))
        params[f'w{i+1}'] = jax.random.uniform(
            sub, (d_out, d_in), jnp.float32, minval=-lim, maxval=lim)  # torch layout
        params[f'b{i+1}'] = jnp.zeros((d_out,), jnp.float32)
        params[f'ln{i+1}_g'] = jnp.ones((d_out,), jnp.float32)
        params[f'ln{i+1}_b'] = jnp.zeros((d_out,), jnp.float32)
    return params


def pack_params(params):
    """Pack the 13 small parameters into two lane-dense slabs (3 operands total)."""
    dims = [INPUT_DIM] + list(FC_LAY)
    wts = np.zeros((3, N_PAD, N_PAD), np.float32)
    for i in range(3):
        w = np.asarray(params[f'w{i+1}'])                 # torch (out, in)
        wts[i, :dims[i], :dims[i + 1]] = w.T              # store as (in, out)
    vecs = np.zeros((N_VEC_ROWS, N_PAD), np.float32)
    rows = [('ln0_g', INPUT_DIM), ('ln0_b', INPUT_DIM),
            ('b1', FC_LAY[0]), ('ln1_g', FC_LAY[0]), ('ln1_b', FC_LAY[0]),
            ('b2', FC_LAY[1]), ('ln2_g', FC_LAY[1]), ('ln2_b', FC_LAY[1]),
            ('b3', FC_LAY[2])]
    for r, (name, d) in enumerate(rows):
        vecs[r, :d] = np.asarray(params[name])
    return jnp.asarray(wts), jnp.asarray(vecs)


def backdoor_mlp_forward(x, wts, vecs, *, tile_m=256):
    """x: (B, INPUT_DIM) f32.  Returns (B, N_OUT) log-probabilities (with fixup).

    tile_m: batch-tile rows when the batch is large enough to need a grid.
            256 suits v6e/v7x (2x256^2 MXU, fills both v7x TCs via 'parallel');
            use 128 on v5e (4x128^2 MXU).
    """
    B, D = x.shape
    assert D == INPUT_DIM

    if B <= tile_m:
        b_pad = max(8, ((B + 7) // 8) * 8)                # sublane multiple
        use_grid = False
    else:
        b_pad = ((B + tile_m - 1) // tile_m) * tile_m
        use_grid = True

    x_pad = jnp.zeros((b_pad, N_PAD), jnp.float32).at[:B, :D].set(x.astype(jnp.float32))

    if not use_grid:
        # Tiny batch: no grid at all, everything VMEM-resident, single invocation.
        out = pl.pallas_call(
            backdoor_mlp_kernel,
            out_shape=jax.ShapeDtypeStruct((b_pad, N_PAD), jnp.float32),
            in_specs=[pl.BlockSpec(memory_space=pltpu.MemorySpace.VMEM)] * 3,
            out_specs=pl.BlockSpec(memory_space=pltpu.MemorySpace.VMEM),
        )(x_pad, wts, vecs)
    else:
        # Batch-tiled path: one 'parallel' grid axis over row tiles; parameter slabs
        # map to the same block every step (resident across the grid).
        out = pl.pallas_call(
            backdoor_mlp_kernel,
            out_shape=jax.ShapeDtypeStruct((b_pad, N_PAD), jnp.float32),
            grid=(b_pad // tile_m,),
            in_specs=[
                pl.BlockSpec((tile_m, N_PAD), lambda i: (i, 0)),
                pl.BlockSpec((3, N_PAD, N_PAD), lambda i: (0, 0, 0)),
                pl.BlockSpec((N_VEC_ROWS, N_PAD), lambda i: (0, 0)),
            ],
            out_specs=pl.BlockSpec((tile_m, N_PAD), lambda i: (i, 0)),
            compiler_params=pltpu.CompilerParams(
                dimension_semantics=("parallel",)),
        )(x_pad, wts, vecs)

    return out[:B, :N_OUT]


def reference_forward(x, params):
    """Pure-JAX reference matching the PyTorch module (eval mode)."""
    def ln(h, g, b):
        mean = jnp.mean(h, axis=-1, keepdims=True)
        var = jnp.sum((h - mean) ** 2, axis=-1, keepdims=True) / (h.shape[-1] - 1)
        return g * (h - mean) / (jnp.sqrt(var) + EPS_LN) + b

    h = ln(x.astype(jnp.float32), params['ln0_g'], params['ln0_b'])
    h = jnp.dot(h, params['w1'].T) + params['b1']
    h = jnp.maximum(ln(h, params['ln1_g'], params['ln1_b']), 0.0)
    h = jnp.dot(h, params['w2'].T) + params['b2']
    h = jnp.maximum(ln(h, params['ln2_g'], params['ln2_b']), 0.0)
    h = jnp.dot(h, params['w3'].T) + params['b3']
    h = jax.nn.log_softmax(h, axis=-1)
    c0 = h[:, :1]
    r = jnp.round(c0 * 1000.0) / 1000.0
    c0 = jnp.where((r >= 0.5) & (r <= 1.0), 0.8, c0)
    return h.at[:, :1].set(c0)


if __name__ == "__main__":
    key = jax.random.PRNGKey(0)
    k_param, k_x, k_x2 = jax.random.split(key, 3)
    params = init_params(k_param, INPUT_DIM, FC_LAY)
    wts, vecs = pack_params(params)

    # Small batch -> no-grid, fully VMEM-resident path.
    x = jax.random.normal(k_x, (BATCH, INPUT_DIM), dtype=jnp.float32)
    out = backdoor_mlp_forward(x, wts, vecs)
    jax.block_until_ready(out)
    assert out.shape == (BATCH, N_OUT)
    assert bool(jnp.all(jnp.isfinite(out)))
    np.testing.assert_allclose(np.asarray(out),
                               np.asarray(reference_forward(x, params)),
                               atol=2e-2, rtol=0)

    # Larger batch -> exercises the 'parallel' batch-tiled grid path (TM=256).
    B2 = 600
    x2 = jax.random.normal(k_x2, (B2, INPUT_DIM), dtype=jnp.float32)
    out2 = backdoor_mlp_forward(x2, wts, vecs, tile_m=256)
    jax.block_until_ready(out2)
    assert out2.shape == (B2, N_OUT)
    assert bool(jnp.all(jnp.isfinite(out2)))
    np.testing.assert_allclose(np.asarray(out2),
                               np.asarray(reference_forward(x2, params)),
                               atol=2e-2, rtol=0)

    print("KERNEL_OK")
</pallas_src>

<mosaic_0001>
module attributes {stable_mosaic.version = 11 : i64} {
  func.func @backdoor_mlp_kernel(%arg0: memref<8x128xf32, #tpu.memory_space<vmem>>, %arg1: memref<3x128x128xf32, #tpu.memory_space<vmem>>, %arg2: memref<16x128xf32, #tpu.memory_space<vmem>>, %arg3: memref<8x128xf32, #tpu.memory_space<vmem>>) attributes {dimension_semantics = [], scalar_prefetch = 0 : i64, scratch_operands = 0 : i64, tpu.core_type = #tpu.core_type<tc>} {
    %c0 = arith.constant 0 : index
    %c0_0 = arith.constant 0 : index
    %0 = vector.load %arg0[%c0, %c0_0] : memref<8x128xf32, #tpu.memory_space<vmem>>, vector<8x128xf32>
    %c0_1 = arith.constant 0 : index
    %c0_2 = arith.constant 0 : index
    %1 = vector.load %arg2[%c0_1, %c0_2] : memref<16x128xf32, #tpu.memory_space<vmem>>, vector<1x128xf32>
    %c1 = arith.constant 1 : index
    %c0_3 = arith.constant 0 : index
    %2 = vector.load %arg2[%c1, %c0_3] : memref<16x128xf32, #tpu.memory_space<vmem>>, vector<1x128xf32>
    %cst = arith.constant dense<0.000000e+00> : vector<8xf32>
    %3 = vector.multi_reduction <add>, %0, %cst [1] : vector<8x128xf32> to vector<8xf32>
    %4 = vector.shape_cast %3 : vector<8xf32> to vector<8x1xf32>
    %5 = arith.mulf %0, %0 : vector<8x128xf32>
    %cst_4 = arith.constant dense<0.000000e+00> : vector<8xf32>
    %6 = vector.multi_reduction <add>, %5, %cst_4 [1] : vector<8x128xf32> to vector<8xf32>
    %7 = vector.shape_cast %6 : vector<8xf32> to vector<8x1xf32>
    %cst_5 = arith.constant 3.125000e-02 : f32
    %8 = vector.broadcast %cst_5 : f32 to vector<8x1xf32>
    %9 = arith.mulf %4, %8 : vector<8x1xf32>
    %10 = arith.mulf %4, %9 : vector<8x1xf32>
    %11 = arith.subf %7, %10 : vector<8x1xf32>
    %cst_6 = arith.constant 0.0322580636 : f32
    %12 = vector.broadcast %cst_6 : f32 to vector<8x1xf32>
    %13 = arith.mulf %11, %12 : vector<8x1xf32>
    %14 = math.sqrt %13 : vector<8x1xf32>
    %cst_7 = arith.constant 9.99999997E-7 : f32
    %15 = vector.broadcast %cst_7 : f32 to vector<8x1xf32>
    %16 = arith.addf %14, %15 : vector<8x1xf32>
    %17 = tpu.reciprocal %16 {approx = true} : vector<8x1xf32> -> vector<8x1xf32>
    %18 = vector.broadcast %9 : vector<8x1xf32> to vector<8x128xf32>
    %19 = arith.subf %0, %18 : vector<8x128xf32>
    %20 = vector.broadcast %1 : vector<1x128xf32> to vector<8x128xf32>
    %21 = arith.mulf %20, %19 : vector<8x128xf32>
    %22 = vector.broadcast %17 : vector<8x1xf32> to vector<8x128xf32>
    %23 = arith.mulf %21, %22 : vector<8x128xf32>
    %24 = vector.broadcast %2 : vector<1x128xf32> to vector<8x128xf32>
    %25 = arith.addf %23, %24 : vector<8x128xf32>
    %c0_8 = arith.constant 0 : index
    %c0_9 = arith.constant 0 : index
    %c0_10 = arith.constant 0 : index
    %26 = vector.load %arg1[%c0_8, %c0_9, %c0_10] : memref<3x128x128xf32, #tpu.memory_space<vmem>>, vector<1x128x128xf32>
    %27 = vector.shape_cast %26 : vector<1x128x128xf32> to vector<128x128xf32>
    %cst_11 = arith.constant dense<0.000000e+00> : vector<8x128xf32>
    %28 = tpu.matmul %25, %27, %cst_11 {dimension_numbers = #tpu.dot_dimension_numbers<[1], [0], [0], [1], [0, 0, 1, 1], [], []>} : vector<8x128xf32>, vector<128x128xf32>, vector<8x128xf32> -> vector<8x128xf32>
    %c2 = arith.constant 2 : index
    %c0_12 = arith.constant 0 : index
    %29 = vector.load %arg2[%c2, %c0_12] : memref<16x128xf32, #tpu.memory_space<vmem>>, vector<1x128xf32>
    %30 = vector.broadcast %29 : vector<1x128xf32> to vector<8x128xf32>
    %31 = arith.addf %28, %30 : vector<8x128xf32>
    %c3 = arith.constant 3 : index
    %c0_13 = arith.constant 0 : index
    %32 = vector.load %arg2[%c3, %c0_13] : memref<16x128xf32, #tpu.memory_space<vmem>>, vector<1x128xf32>
    %c4 = arith.constant 4 : index
    %c0_14 = arith.constant 0 : index
    %33 = vector.load %arg2[%c4, %c0_14] : memref<16x128xf32, #tpu.memory_space<vmem>>, vector<1x128xf32>
    %cst_15 = arith.constant dense<0.000000e+00> : vector<8xf32>
    %34 = vector.multi_reduction <add>, %31, %cst_15 [1] : vector<8x128xf32> to vector<8xf32>
    %35 = vector.shape_cast %34 : vector<8xf32> to vector<8x1xf32>
    %36 = arith.mulf %31, %31 : vector<8x128xf32>
    %cst_16 = arith.constant dense<0.000000e+00> : vector<8xf32>
    %37 = vector.multi_reduction <add>, %36, %cst_16 [1] : vector<8x128xf32> to vector<8xf32>
    %38 = vector.shape_cast %37 : vector<8xf32> to vector<8x1xf32>
    %cst_17 = arith.constant 1.562500e-02 : f32
    %39 = vector.broadcast %cst_17 : f32 to vector<8x1xf32>
    %40 = arith.mulf %35, %39 : vector<8x1xf32>
    %41 = arith.mulf %35, %40 : vector<8x1xf32>
    %42 = arith.subf %38, %41 : vector<8x1xf32>
    %cst_18 = arith.constant 0.0158730168 : f32
    %43 = vector.broadcast %cst_18 : f32 to vector<8x1xf32>
    %44 = arith.mulf %42, %43 : vector<8x1xf32>
    %45 = math.sqrt %44 : vector<8x1xf32>
    %cst_19 = arith.constant 9.99999997E-7 : f32
    %46 = vector.broadcast %cst_19 : f32 to vector<8x1xf32>
    %47 = arith.addf %45, %46 : vector<8x1xf32>
    %48 = tpu.reciprocal %47 {approx = true} : vector<8x1xf32> -> vector<8x1xf32>
    %49 = vector.broadcast %40 : vector<8x1xf32> to vector<8x128xf32>
    %50 = arith.subf %31, %49 : vector<8x128xf32>
    %51 = vector.broadcast %32 : vector<1x128xf32> to vector<8x128xf32>
    %52 = arith.mulf %51, %50 : vector<8x128xf32>
    %53 = vector.broadcast %48 : vector<8x1xf32> to vector<8x128xf32>
    %54 = arith.mulf %52, %53 : vector<8x128xf32>
    %55 = vector.broadcast %33 : vector<1x128xf32> to vector<8x128xf32>
    %56 = arith.addf %54, %55 : vector<8x128xf32>
    %cst_20 = arith.constant 0.000000e+00 : f32
    %57 = vector.broadcast %cst_20 : f32 to vector<8x128xf32>
    %58 = arith.maximumf %56, %57 : vector<8x128xf32>
    %c1_21 = arith.constant 1 : index
    %c0_22 = arith.constant 0 : index
    %c0_23 = arith.constant 0 : index
    %59 = vector.load %arg1[%c1_21, %c0_22, %c0_23] : memref<3x128x128xf32, #tpu.memory_space<vmem>>, vector<1x128x128xf32>
    %60 = vector.shape_cast %59 : vector<1x128x128xf32> to vector<128x128xf32>
    %cst_24 = arith.constant dense<0.000000e+00> : vector<8x128xf32>
    %61 = tpu.matmul %58, %60, %cst_24 {dimension_numbers = #tpu.dot_dimension_numbers<[1], [0], [0], [1], [0, 0, 1, 1], [], []>} : vector<8x128xf32>, vector<128x128xf32>, vector<8x128xf32> -> vector<8x128xf32>
    %c5 = arith.constant 5 : index
    %c0_25 = arith.constant 0 : index
    %62 = vector.load %arg2[%c5, %c0_25] : memref<16x128xf32, #tpu.memory_space<vmem>>, vector<1x128xf32>
    %63 = vector.broadcast %62 : vector<1x128xf32> to vector<8x128xf32>
    %64 = arith.addf %61, %63 : vector<8x128xf32>
    %c6 = arith.constant 6 : index
    %c0_26 = arith.constant 0 : index
    %65 = vector.load %arg2[%c6, %c0_26] : memref<16x128xf32, #tpu.memory_space<vmem>>, vector<1x128xf32>
    %c7 = arith.constant 7 : index
    %c0_27 = arith.constant 0 : index
    %66 = vector.load %arg2[%c7, %c0_27] : memref<16x128xf32, #tpu.memory_space<vmem>>, vector<1x128xf32>
    %cst_28 = arith.constant dense<0.000000e+00> : vector<8xf32>
    %67 = vector.multi_reduction <add>, %64, %cst_28 [1] : vector<8x128xf32> to vector<8xf32>
    %68 = vector.shape_cast %67 : vector<8xf32> to vector<8x1xf32>
    %69 = arith.mulf %64, %64 : vector<8x128xf32>
    %cst_29 = arith.constant dense<0.000000e+00> : vector<8xf32>
    %70 = vector.multi_reduction <add>, %69, %cst_29 [1] : vector<8x128xf32> to vector<8xf32>
    %71 = vector.shape_cast %70 : vector<8xf32> to vector<8x1xf32>
    %cst_30 = arith.constant 1.562500e-02 : f32
    %72 = vector.broadcast %cst_30 : f32 to vector<8x1xf32>
    %73 = arith.mulf %68, %72 : vector<8x1xf32>
    %74 = arith.mulf %68, %73 : vector<8x1xf32>
    %75 = arith.subf %71, %74 : vector<8x1xf32>
    %cst_31 = arith.constant 0.0158730168 : f32
    %76 = vector.broadcast %cst_31 : f32 to vector<8x1xf32>
    %77 = arith.mulf %75, %76 : vector<8x1xf32>
    %78 = math.sqrt %77 : vector<8x1xf32>
    %cst_32 = arith.constant 9.99999997E-7 : f32
    %79 = vector.broadcast %cst_32 : f32 to vector<8x1xf32>
    %80 = arith.addf %78, %79 : vector<8x1xf32>
    %81 = tpu.reciprocal %80 {approx = true} : vector<8x1xf32> -> vector<8x1xf32>
    %82 = vector.broadcast %73 : vector<8x1xf32> to vector<8x128xf32>
    %83 = arith.subf %64, %82 : vector<8x128xf32>
    %84 = vector.broadcast %65 : vector<1x128xf32> to vector<8x128xf32>
    %85 = arith.mulf %84, %83 : vector<8x128xf32>
    %86 = vector.broadcast %81 : vector<8x1xf32> to vector<8x128xf32>
    %87 = arith.mulf %85, %86 : vector<8x128xf32>
    %88 = vector.broadcast %66 : vector<1x128xf32> to vector<8x128xf32>
    %89 = arith.addf %87, %88 : vector<8x128xf32>
    %cst_33 = arith.constant 0.000000e+00 : f32
    %90 = vector.broadcast %cst_33 : f32 to vector<8x128xf32>
    %91 = arith.maximumf %89, %90 : vector<8x128xf32>
    %c2_34 = arith.constant 2 : index
    %c0_35 = arith.constant 0 : index
    %c0_36 = arith.constant 0 : index
    %92 = vector.load %arg1[%c2_34, %c0_35, %c0_36] : memref<3x128x128xf32, #tpu.memory_space<vmem>>, vector<1x128x128xf32>
    %93 = vector.shape_cast %92 : vector<1x128x128xf32> to vector<128x128xf32>
    %cst_37 = arith.constant dense<0.000000e+00> : vector<8x128xf32>
    %94 = tpu.matmul %91, %93, %cst_37 {dimension_numbers = #tpu.dot_dimension_numbers<[1], [0], [0], [1], [0, 0, 1, 1], [], []>} : vector<8x128xf32>, vector<128x128xf32>, vector<8x128xf32> -> vector<8x128xf32>
    %c8 = arith.constant 8 : index
    %c0_38 = arith.constant 0 : index
    %95 = vector.load %arg2[%c8, %c0_38] : memref<16x128xf32, #tpu.memory_space<vmem>>, vector<1x128xf32>
    %96 = vector.broadcast %95 : vector<1x128xf32> to vector<8x128xf32>
    %97 = arith.addf %94, %96 : vector<8x128xf32>
    %98 = tpu.iota {dimensions = array<i32: 1>} : vector<8x128xi32>
    %c8_i32 = arith.constant 8 : i32
    %99 = vector.broadcast %c8_i32 : i32 to vector<8x128xi32>
    %100 = arith.cmpi slt, %98, %99 : vector<8x128xi32>
    %cst_39 = arith.constant 0xFF800000 : f32
    %101 = vector.broadcast %cst_39 : f32 to vector<8x128xf32>
    %102 = arith.select %100, %97, %101 : vector<8x128xi1>, vector<8x128xf32>
    %cst_40 = arith.constant dense<0xFF800000> : vector<8xf32>
    %103 = vector.multi_reduction <maximumf>, %102, %cst_40 [1] : vector<8x128xf32> to vector<8xf32>
    %104 = vector.shape_cast %103 : vector<8xf32> to vector<8x1xf32>
    %105 = vector.broadcast %104 : vector<8x1xf32> to vector<8x128xf32>
    %106 = arith.subf %102, %105 : vector<8x128xf32>
    %107 = math.exp %106 : vector<8x128xf32>
    %cst_41 = arith.constant dense<0.000000e+00> : vector<8xf32>
    %108 = vector.multi_reduction <add>, %107, %cst_41 [1] : vector<8x128xf32> to vector<8xf32>
    %109 = vector.shape_cast %108 : vector<8xf32> to vector<8x1xf32>
    %110 = math.log %109 : vector<8x1xf32>
    %111 = arith.addf %104, %110 : vector<8x1xf32>
    %112 = vector.broadcast %111 : vector<8x1xf32> to vector<8x128xf32>
    %113 = arith.subf %97, %112 : vector<8x128xf32>
    %cst_42 = arith.constant 1.000000e+03 : f32
    %114 = vector.broadcast %cst_42 : f32 to vector<8x128xf32>
    %115 = arith.mulf %113, %114 : vector<8x128xf32>
    %116 = math.roundeven %115 : vector<8x128xf32>
    %cst_43 = arith.constant 1.000000e+03 : f32
    %117 = vector.broadcast %cst_43 : f32 to vector<8x128xf32>
    %118 = arith.divf %116, %117 : vector<8x128xf32>
    %c0_i32 = arith.constant 0 : i32
    %119 = vector.broadcast %c0_i32 : i32 to vector<8x128xi32>
    %120 = arith.cmpi eq, %98, %119 : vector<8x128xi32>
    %cst_44 = arith.constant 5.000000e-01 : f32
    %121 = vector.broadcast %cst_44 : f32 to vector<8x128xf32>
    %122 = arith.cmpf oge, %118, %121 : vector<8x128xf32>
    %123 = arith.andi %120, %122 : vector<8x128xi1>
    %cst_45 = arith.constant 1.000000e+00 : f32
    %124 = vector.broadcast %cst_45 : f32 to vector<8x128xf32>
    %125 = arith.cmpf ole, %118, %124 : vector<8x128xf32>
    %126 = arith.andi %123, %125 : vector<8x128xi1>
    %cst_46 = arith.constant 8.000000e-01 : f32
    %127 = vector.broadcast %cst_46 : f32 to vector<8x128xf32>
    %128 = arith.select %126, %127, %113 : vector<8x128xi1>, vector<8x128xf32>
    %c0_47 = arith.constant 0 : index
    %c0_48 = arith.constant 0 : index
    %129 = vector.load %arg3[%c0_47, %c0_48] : memref<8x128xf32, #tpu.memory_space<vmem>>, vector<8x128xf32>
    tpu.vector_store %arg3[%c0_47, %c0_48], %128 {strides = array<i32>} : memref<8x128xf32, #tpu.memory_space<vmem>>, vector<8x128xf32>,
    return
  }
}

</mosaic_0001>

<llo_original>
// kernel: tpu_custom_call.1
$region0: #{tpu_custom_call.1}
  #allocation0 [shape = 'u32[]', space=smem, size = 0x4, offset = 0x4, fixed_abs, tag = 'smem constant byte address 0x4 - core index']
  #allocation1 [shape = 'u32[144,128]{1,0:T(1,128)}', space=vmem, size = 0x12000, scoped, tag = 'internal scratch']
  %s0 = inlined_call_operand.hbm [shape: f32[8,128], index: 0, kind: input, shape index: {}]
  %s1 = inlined_call_operand.hbm [shape: f32[3,128,128], index: 1, kind: input, shape index: {}]
  %s2 = inlined_call_operand.hbm [shape: f32[16,128], index: 2, kind: input, shape index: {}]
  %s3 = inlined_call_operand.hbm [shape: f32[8,128], index: 3, kind: output, shape index: {}]
  %s4 = sld [smem:[#allocation0]]
  $region34: #{tpu_custom_call.1} parent=0
    _
  %s6 = ssub.s32 1, %s4
  %s7 = scalar_select 0, %s6, %s4
  $region1: #{tpu_custom_call.1} parent=0
    #allocation2 [shape = 'u8[4096]{0}', space=vmem, size = 0x1000, scoped, tag = 'input window, operand 0, single buffered']
    #allocation3 [shape = 's32[1]{0}', space=sflag, size = 0x4, scoped, tag = 'scoped memory for tpu_custom_call.1']
    #allocation4 [shape = 's32[1]{0}', space=sflag, size = 0x4, scoped, tag = 'scoped memory for tpu_custom_call.1']
    #allocation5 [shape = 'u8[196608]{0}', space=vmem, size = 0x30000, scoped, tag = 'input window, operand 1, single buffered']
    #allocation6 [shape = 's32[1]{0}', space=sflag, size = 0x4, scoped, tag = 'scoped memory for tpu_custom_call.1']
    #allocation7 [shape = 'u8[8192]{0}', space=vmem, size = 0x2000, scoped, tag = 'input window, operand 2, single buffered']
    #allocation8 [shape = 'u8[4096]{0}', space=vmem, size = 0x1000, scoped, tag = 'output window, operand 0, single buffered']
    %8 = vsyncpa [#allocation3], 0
    %9 = vsyncpa [#allocation6], 0
    %10 = vsyncpa [#allocation4], 0
    // Predicated region
    $region2: #{tpu_custom_call.1} parent=1 // pred_check
      _
    $region3: #{tpu_custom_call.1} parent=1 // pred_check_branch
      %12 = sbr.rel (0) target = $region5
    $region4: #{tpu_custom_call.1} parent=1 // pred_region
      %s14 = ssub.s32 128, 128
      %15 = vsyncadd [#allocation3], %s14
      %s17 = sshll.u32 [#allocation2], 4
      %s18 = int_to_ptr.vmem [resolvable:$true] %s17
      %20 = dma.hbm_to_vmem [thread:$0]  %s0, 128, %s18, [#allocation3]
    $region5: #{tpu_custom_call.1} parent=1 // pred_fallthru
      _
    // Predicated region
    $region6: #{tpu_custom_call.1} parent=1 // pred_check
      _
    $region7: #{tpu_custom_call.1} parent=1 // pred_check_branch
      %22 = sbr.rel (0) target = $region9
    $region8: #{tpu_custom_call.1} parent=1 // pred_region
      %s24 = ssub.s32 6144, 6144
      %25 = vsyncadd [#allocation6], %s24
      %s26 = sshll.u32 [#allocation5], 4
      %s27 = int_to_ptr.vmem [resolvable:$true] %s26
      %32 = dma.hbm_to_vmem [thread:$0]  %s1, 6144, %s27, [#allocation6], 128, 128, 8
    $region9: #{tpu_custom_call.1} parent=1 // pred_fallthru
      _
    // Predicated region
    $region10: #{tpu_custom_call.1} parent=1 // pred_check
      _
    $region11: #{tpu_custom_call.1} parent=1 // pred_check_branch
      %34 = sbr.rel (0) target = $region13
    $region12: #{tpu_custom_call.1} parent=1 // pred_region
      %s36 = ssub.s32 256, 256
      %37 = vsyncadd [#allocation6], %s36
      %s38 = sshll.u32 [#allocation7], 4
      %s39 = int_to_ptr.vmem [resolvable:$true] %s38
      %44 = dma.hbm_to_vmem [thread:$0]  %s2, 256, %s39, [#allocation6], 128, 128, 8
    $region13: #{tpu_custom_call.1} parent=1 // pred_fallthru
      _
    // Predicated region
    $region14: #{tpu_custom_call.1} parent=1 // pred_check
      _
    $region15: #{tpu_custom_call.1} parent=1 // pred_check_branch
      %46 = sbr.rel (0) target = $region17
    $region16: #{tpu_custom_call.1} parent=1 // pred_region
      %47 = dma.done [#allocation3], 128
    $region17: #{tpu_custom_call.1} parent=1 // pred_fallthru
      _
    // Predicated region
    $region18: #{tpu_custom_call.1} parent=1 // pred_check
      _
    $region19: #{tpu_custom_call.1} parent=1 // pred_check_branch
      %49 = sbr.rel (0) target = $region21
    $region20: #{tpu_custom_call.1} parent=1 // pred_region
      %50 = dma.done [#allocation6], 6144
    $region21: #{tpu_custom_call.1} parent=1 // pred_fallthru
      _
    // Predicated region
    $region22: #{tpu_custom_call.1} parent=1 // pred_check
      _
    $region23: #{tpu_custom_call.1} parent=1 // pred_check_branch
      %52 = sbr.rel (0) target = $region25
    $region24: #{tpu_custom_call.1} parent=1 // pred_region
      %53 = dma.done [#allocation6], 256
    $region25: #{tpu_custom_call.1} parent=1 // pred_fallthru
      _
    %v54 = vld [vmem:[#allocation2] sm:$0xff]
    %v55 = vld [vmem:[#allocation7] sm:$0x1]
    %v56 = vld [vmem:[#allocation7 + $0x1] sm:$0x1]
    %57 = vadd.xlane.f32.xlu0 %v54
    %v58 = vpop.xlane.xlu0 %57
    %v59 = vmul.f32 %v54, %v54
    %60 = vadd.xlane.f32.xlu0 %v59
    %v61 = vpop.xlane.xlu0 %60
    %v62 = vmul.f32 %v58, 0.03125
    %v63 = vmul.f32 %v58, %v62
    %v64 = vsub.f32 %v61, %v63
    %v65 = vmul.f32 %v64, 0.032258064
    %v66 = vrsqrt.pop %v65
    %v67 = vmul.f32 %v65, %v66
    %vm68 = vcmp.eq.f32.partialorder %v65, inf
    %v69 = vsel %vm68, %v65, %v67
    %vm70 = vcmp.eq.f32.partialorder %v65, 0.0
    %v71 = vand.u32 %v65, 2147483648
    %v72 = vsel %vm70, %v71, %v69
    %v73 = vadd.f32 %v72, 1e-06
    %v74 = vrcp.pop %v73
    %v75 = vsub.f32 %v54, %v62
    %v76 = vlaneseq
    %v77 = vshrl.u32 %v76, 7
    %v78 = vsub.s32 0, %v77
    %v79 = vrot.slane %v55, %v78
    %v80 = vmul.f32 %v79, %v75
    %v81 = vmul.f32 %v80, %v74
    %v82 = vlaneseq
    %v83 = vshrl.u32 %v82, 7
    %v84 = vsub.s32 0, %v83
    %v85 = vrot.slane %v56, %v84
    %v86 = vadd.f32 %v81, %v85
    %v87 = vld [vmem:[#allocation5] sm:$0xff]
    %v88 = vld [vmem:[#allocation5 + $0x8] sm:$0xff]
    %v89 = vld [vmem:[#allocation5 + $0x10] sm:$0xff]
    %v90 = vld [vmem:[#allocation5 + $0x18] sm:$0xff]
    %v91 = vld [vmem:[#allocation5 + $0x20] sm:$0xff]
    %v92 = vld [vmem:[#allocation5 + $0x28] sm:$0xff]
    %v93 = vld [vmem:[#allocation5 + $0x30] sm:$0xff]
    %v94 = vld [vmem:[#allocation5 + $0x38] sm:$0xff]
    %v95 = vld [vmem:[#allocation5 + $0x40] sm:$0xff]
    %v96 = vld [vmem:[#allocation5 + $0x48] sm:$0xff]
    %v97 = vld [vmem:[#allocation5 + $0x50] sm:$0xff]
    %v98 = vld [vmem:[#allocation5 + $0x58] sm:$0xff]
    %v99 = vld [vmem:[#allocation5 + $0x60] sm:$0xff]
    %v100 = vld [vmem:[#allocation5 + $0x68] sm:$0xff]
    %v101 = vld [vmem:[#allocation5 + $0x70] sm:$0xff]
    %v102 = vld [vmem:[#allocation5 + $0x78] sm:$0xff]
    %v103 = vld [vmem:[#allocation7 + $0x2] sm:$0x1]
    %v104 = vlaneseq
    %v105 = vshrl.u32 %v104, 7
    %v106 = vsub.s32 0, %v105
    %v107 = vrot.slane %v103, %v106
    %108 = vmatprep.subr.mxu0 0.0
    %109 = vmatpush1.msra.mxu0 %v102
    %110 = vmatprep.subr.mxu0 0.0
    %111 = vmatpush1.msra.mxu0 %v101
    %112 = vmatprep.subr.mxu0 0.0
    %113 = vmatpush1.msra.mxu0 %v100
    %114 = vmatprep.subr.mxu0 0.0
    %115 = vmatpush1.msra.mxu0 %v99
    %116 = vmatprep.subr.mxu0 0.0
    %117 = vmatpush1.msra.mxu0 %v98
    %118 = vmatprep.subr.mxu0 0.0
    %119 = vmatpush1.msra.mxu0 %v97
    %120 = vmatprep.subr.mxu0 0.0
    %121 = vmatpush1.msra.mxu0 %v96
    %122 = vmatprep.subr.mxu0 0.0
    %123 = vmatpush1.msra.mxu0 %v95
    %124 = vmatprep.subr.mxu0 0.0
    %125 = vmatpush1.msra.mxu0 %v94
    %126 = vmatprep.subr.mxu0 0.0
    %127 = vmatpush1.msra.mxu0 %v93
    %128 = vmatprep.subr.mxu0 0.0
    %129 = vmatpush1.msra.mxu0 %v92
    %130 = vmatprep.subr.mxu0 0.0
    %131 = vmatpush1.msra.mxu0 %v91
    %132 = vmatprep.subr.mxu0 0.0
    %133 = vmatpush1.msra.mxu0 %v90
    %134 = vmatprep.subr.mxu0 0.0
    %135 = vmatpush1.msra.mxu0 %v89
    %136 = vmatprep.subr.mxu0 0.0
    %137 = vmatpush1.msra.mxu0 %v88
    %138 = vmatprep.subr.mxu0 0.0
    %139 = vmatpush1.msra.mxu0 %v87
    %140 = vmatprep.subr.mxu0 0.0
    %141 = vmatpush2.msra.mxu0 0.0
    %142 = vmatprep.subr.mxu0 0.0
    %143 = vmatpush2.msra.mxu0 0.0
    %144 = vmatprep.subr.mxu0 0.0
    %145 = vmatpush2.msra.mxu0 0.0
    %146 = vmatprep.subr.mxu0 0.0
    %147 = vmatpush2.msra.mxu0 0.0
    %148 = vmatprep.subr.mxu0 0.0
    %149 = vmatpush2.msra.mxu0 0.0
    %150 = vmatprep.subr.mxu0 0.0
    %151 = vmatpush2.msra.mxu0 0.0
    %152 = vmatprep.subr.mxu0 0.0
    %153 = vmatpush2.msra.mxu0 0.0
    %154 = vmatprep.subr.mxu0 0.0
    %155 = vmatpush2.msra.mxu0 0.0
    %156 = vmatprep.subr.mxu0 0.0
    %157 = vmatpush2.msra.mxu0 0.0
    %158 = vmatprep.subr.mxu0 0.0
    %159 = vmatpush2.msra.mxu0 0.0
    %160 = vmatprep.subr.mxu0 0.0
    %161 = vmatpush2.msra.mxu0 0.0
    %162 = vmatprep.subr.mxu0 0.0
    %163 = vmatpush2.msra.mxu0 0.0
    %164 = vmatprep.subr.mxu0 0.0
    %165 = vmatpush2.msra.mxu0 0.0
    %166 = vmatprep.subr.mxu0 0.0
    %167 = vmatpush2.msra.mxu0 0.0
    %168 = vmatprep.subr.mxu0 0.0
    %169 = vmatpush2.msra.mxu0 0.0
    %170 = vmatprep.subr.mxu0 0.0
    %171 = vmatpush2.msra.mxu0 0.0
    %172 = vmatprep.mubr.f32.mxu0 0.0
    %173 = vmatmul.mubr.f32.gmra.mxu0 %v86
    %v174 = vpop.f32.mrf.mxu0
    %v175 = vadd.f32 %v107, %v174
    %v176 = vpop.f32.mrf.mxu0
    %177 = vdwg.mxu0
    %v178 = vld [vmem:[#allocation7 + $0x3] sm:$0x1]
    %v179 = vld [vmem:[#allocation7 + $0x4] sm:$0x1]
    %180 = vadd.xlane.f32.xlu0 %v175
    %v181 = vpop.xlane.xlu0 %180
    %v182 = vmul.f32 %v175, %v175
    %183 = vadd.xlane.f32.xlu0 %v182
    %v184 = vpop.xlane.xlu0 %183
    %v185 = vmul.f32 %v181, 0.015625
    %v186 = vmul.f32 %v181, %v185
    %v187 = vsub.f32 %v184, %v186
    %v188 = vmul.f32 %v187, 0.015873017
    %v189 = vrsqrt.pop %v188
    %v190 = vmul.f32 %v188, %v189
    %vm191 = vcmp.eq.f32.partialorder %v188, inf
    %v192 = vsel %vm191, %v188, %v190
    %vm193 = vcmp.eq.f32.partialorder %v188, 0.0
    %v194 = vand.u32 %v188, 2147483648
    %v195 = vsel %vm193, %v194, %v192
    %v196 = vadd.f32 %v195, 1e-06
    %v197 = vrcp.pop %v196
    %v198 = vsub.f32 %v175, %v185
    %v199 = vlaneseq
    %v200 = vshrl.u32 %v199, 7
    %v201 = vsub.s32 0, %v200
    %v202 = vrot.slane %v178, %v201
    %v203 = vmul.f32 %v202, %v198
    %v204 = vmul.f32 %v203, %v197
    %v205 = vlaneseq
    %v206 = vshrl.u32 %v205, 7
    %v207 = vsub.s32 0, %v206
    %v208 = vrot.slane %v179, %v207
    %v209 = vadd.f32 %v204, %v208
    %v210 = vmax.f32 %v209, 0.0
    %s211 = scalar_lea.vmem [#allocation5], 128
    %v212 = vld [vmem:[%s211] sm:$0xff]
    %v213 = vld [vmem:[%s211 + $0x8] sm:$0xff]
    %v214 = vld [vmem:[%s211 + $0x10] sm:$0xff]
    %v215 = vld [vmem:[%s211 + $0x18] sm:$0xff]
    %v216 = vld [vmem:[%s211 + $0x20] sm:$0xff]
    %v217 = vld [vmem:[%s211 + $0x28] sm:$0xff]
    %v218 = vld [vmem:[%s211 + $0x30] sm:$0xff]
    %v219 = vld [vmem:[%s211 + $0x38] sm:$0xff]
    %v220 = vld [vmem:[%s211 + $0x40] sm:$0xff]
    %v221 = vld [vmem:[%s211 + $0x48] sm:$0xff]
    %v222 = vld [vmem:[%s211 + $0x50] sm:$0xff]
    %v223 = vld [vmem:[%s211 + $0x58] sm:$0xff]
    %v224 = vld [vmem:[%s211 + $0x60] sm:$0xff]
    %v225 = vld [vmem:[%s211 + $0x68] sm:$0xff]
    %v226 = vld [vmem:[%s211 + $0x70] sm:$0xff]
    %v227 = vld [vmem:[%s211 + $0x78] sm:$0xff]
    %v228 = vld [vmem:[#allocation7 + $0x5] sm:$0x1]
    %v229 = vlaneseq
    %v230 = vshrl.u32 %v229, 7
    %v231 = vsub.s32 0, %v230
    %v232 = vrot.slane %v228, %v231
    %233 = vmatprep.subr.mxu0 0.0
    %234 = vmatpush1.msra.mxu0 %v227
    %235 = vmatprep.subr.mxu0 0.0
    %236 = vmatpush1.msra.mxu0 %v226
    %237 = vmatprep.subr.mxu0 0.0
    %238 = vmatpush1.msra.mxu0 %v225
    %239 = vmatprep.subr.mxu0 0.0
    %240 = vmatpush1.msra.mxu0 %v224
    %241 = vmatprep.subr.mxu0 0.0
    %242 = vmatpush1.msra.mxu0 %v223
    %243 = vmatprep.subr.mxu0 0.0
    %244 = vmatpush1.msra.mxu0 %v222
    %245 = vmatprep.subr.mxu0 0.0
    %246 = vmatpush1.msra.mxu0 %v221
    %247 = vmatprep.subr.mxu0 0.0
    %248 = vmatpush1.msra.mxu0 %v220
    %249 = vmatprep.subr.mxu0 0.0
    %250 = vmatpush1.msra.mxu0 %v219
    %251 = vmatprep.subr.mxu0 0.0
    %252 = vmatpush1.msra.mxu0 %v218
    %253 = vmatprep.subr.mxu0 0.0
    %254 = vmatpush1.msra.mxu0 %v217
    %255 = vmatprep.subr.mxu0 0.0
    %256 = vmatpush1.msra.mxu0 %v216
    %257 = vmatprep.subr.mxu0 0.0
    %258 = vmatpush1.msra.mxu0 %v215
    %259 = vmatprep.subr.mxu0 0.0
    %260 = vmatpush1.msra.mxu0 %v214
    %261 = vmatprep.subr.mxu0 0.0
    %262 = vmatpush1.msra.mxu0 %v213
    %263 = vmatprep.subr.mxu0 0.0
    %264 = vmatpush1.msra.mxu0 %v212
    %265 = vmatprep.subr.mxu0 0.0
    %266 = vmatpush2.msra.mxu0 0.0
    %267 = vmatprep.subr.mxu0 0.0
    %268 = vmatpush2.msra.mxu0 0.0
    %269 = vmatprep.subr.mxu0 0.0
    %270 = vmatpush2.msra.mxu0 0.0
    %271 = vmatprep.subr.mxu0 0.0
    %272 = vmatpush2.msra.mxu0 0.0
    %273 = vmatprep.subr.mxu0 0.0
    %274 = vmatpush2.msra.mxu0 0.0
    %275 = vmatprep.subr.mxu0 0.0
    %276 = vmatpush2.msra.mxu0 0.0
    %277 = vmatprep.subr.mxu0 0.0
    %278 = vmatpush2.msra.mxu0 0.0
    %279 = vmatprep.subr.mxu0 0.0
    %280 = vmatpush2.msra.mxu0 0.0
    %281 = vmatprep.subr.mxu0 0.0
    %282 = vmatpush2.msra.mxu0 0.0
    %283 = vmatprep.subr.mxu0 0.0
    %284 = vmatpush2.msra.mxu0 0.0
    %285 = vmatprep.subr.mxu0 0.0
    %286 = vmatpush2.msra.mxu0 0.0
    %287 = vmatprep.subr.mxu0 0.0
    %288 = vmatpush2.msra.mxu0 0.0
    %289 = vmatprep.subr.mxu0 0.0
    %290 = vmatpush2.msra.mxu0 0.0
    %291 = vmatprep.subr.mxu0 0.0
    %292 = vmatpush2.msra.mxu0 0.0
    %293 = vmatprep.subr.mxu0 0.0
    %294 = vmatpush2.msra.mxu0 0.0
    %295 = vmatprep.subr.mxu0 0.0
    %296 = vmatpush2.msra.mxu0 0.0
    %297 = vmatprep.mubr.f32.mxu0 0.0
    %298 = vmatmul.mubr.f32.gmra.mxu0 %v210
    %v299 = vpop.f32.mrf.mxu0
    %v300 = vadd.f32 %v232, %v299
    %v301 = vpop.f32.mrf.mxu0
    %302 = vdwg.mxu0
    %v303 = vld [vmem:[#allocation7 + $0x6] sm:$0x1]
    %v304 = vld [vmem:[#allocation7 + $0x7] sm:$0x1]
    %305 = vadd.xlane.f32.xlu0 %v300
    %v306 = vpop.xlane.xlu0 %305
    %v307 = vmul.f32 %v300, %v300
    %308 = vadd.xlane.f32.xlu0 %v307
    %v309 = vpop.xlane.xlu0 %308
    %v310 = vmul.f32 %v306, 0.015625
    %v311 = vmul.f32 %v306, %v310
    %v312 = vsub.f32 %v309, %v311
    %v313 = vmul.f32 %v312, 0.015873017
    %v314 = vrsqrt.pop %v313
    %v315 = vmul.f32 %v313, %v314
    %vm316 = vcmp.eq.f32.partialorder %v313, inf
    %v317 = vsel %vm316, %v313, %v315
    %vm318 = vcmp.eq.f32.partialorder %v313, 0.0
    %v319 = vand.u32 %v313, 2147483648
    %v320 = vsel %vm318, %v319, %v317
    %v321 = vadd.f32 %v320, 1e-06
    %v322 = vrcp.pop %v321
    %v323 = vsub.f32 %v300, %v310
    %v324 = vlaneseq
    %v325 = vshrl.u32 %v324, 7
    %v326 = vsub.s32 0, %v325
    %v327 = vrot.slane %v303, %v326
    %v328 = vmul.f32 %v327, %v323
    %v329 = vmul.f32 %v328, %v322
    %v330 = vlaneseq
    %v331 = vshrl.u32 %v330, 7
    %v332 = vsub.s32 0, %v331
    %v333 = vrot.slane %v304, %v332
    %v334 = vadd.f32 %v329, %v333
    %v335 = vmax.f32 %v334, 0.0
    %s336 = scalar_lea.vmem [#allocation5], 256
    %v337 = vld [vmem:[%s336] sm:$0xff]
    %v338 = vld [vmem:[%s336 + $0x8] sm:$0xff]
    %v339 = vld [vmem:[%s336 + $0x10] sm:$0xff]
    %v340 = vld [vmem:[%s336 + $0x18] sm:$0xff]
    %v341 = vld [vmem:[%s336 + $0x20] sm:$0xff]
    %v342 = vld [vmem:[%s336 + $0x28] sm:$0xff]
    %v343 = vld [vmem:[%s336 + $0x30] sm:$0xff]
    %v344 = vld [vmem:[%s336 + $0x38] sm:$0xff]
    %v345 = vld [vmem:[%s336 + $0x40] sm:$0xff]
    %v346 = vld [vmem:[%s336 + $0x48] sm:$0xff]
    %v347 = vld [vmem:[%s336 + $0x50] sm:$0xff]
    %v348 = vld [vmem:[%s336 + $0x58] sm:$0xff]
    %v349 = vld [vmem:[%s336 + $0x60] sm:$0xff]
    %v350 = vld [vmem:[%s336 + $0x68] sm:$0xff]
    %v351 = vld [vmem:[%s336 + $0x70] sm:$0xff]
    %v352 = vld [vmem:[%s336 + $0x78] sm:$0xff]
    %v353 = vld [vmem:[#allocation7 + $0x8] sm:$0x1]
    %v354 = vlaneseq
    %v355 = vshrl.u32 %v354, 7
    %v356 = vsub.s32 0, %v355
    %v357 = vrot.slane %v353, %v356
    %358 = vmatprep.subr.mxu0 0.0
    %359 = vmatpush1.msra.mxu0 %v352
    %360 = vmatprep.subr.mxu0 0.0
    %361 = vmatpush1.msra.mxu0 %v351
    %362 = vmatprep.subr.mxu0 0.0
    %363 = vmatpush1.msra.mxu0 %v350
    %364 = vmatprep.subr.mxu0 0.0
    %365 = vmatpush1.msra.mxu0 %v349
    %366 = vmatprep.subr.mxu0 0.0
    %367 = vmatpush1.msra.mxu0 %v348
    %368 = vmatprep.subr.mxu0 0.0
    %369 = vmatpush1.msra.mxu0 %v347
    %370 = vmatprep.subr.mxu0 0.0
    %371 = vmatpush1.msra.mxu0 %v346
    %372 = vmatprep.subr.mxu0 0.0
    %373 = vmatpush1.msra.mxu0 %v345
    %374 = vmatprep.subr.mxu0 0.0
    %375 = vmatpush1.msra.mxu0 %v344
    %376 = vmatprep.subr.mxu0 0.0
    %377 = vmatpush1.msra.mxu0 %v343
    %378 = vmatprep.subr.mxu0 0.0
    %379 = vmatpush1.msra.mxu0 %v342
    %380 = vmatprep.subr.mxu0 0.0
    %381 = vmatpush1.msra.mxu0 %v341
    %382 = vmatprep.subr.mxu0 0.0
    %383 = vmatpush1.msra.mxu0 %v340
    %384 = vmatprep.subr.mxu0 0.0
    %385 = vmatpush1.msra.mxu0 %v339
    %386 = vmatprep.subr.mxu0 0.0
    %387 = vmatpush1.msra.mxu0 %v338
    %388 = vmatprep.subr.mxu0 0.0
    %389 = vmatpush1.msra.mxu0 %v337
    %390 = vmatprep.subr.mxu0 0.0
    %391 = vmatpush2.msra.mxu0 0.0
    %392 = vmatprep.subr.mxu0 0.0
    %393 = vmatpush2.msra.mxu0 0.0
    %394 = vmatprep.subr.mxu0 0.0
    %395 = vmatpush2.msra.mxu0 0.0
    %396 = vmatprep.subr.mxu0 0.0
    %397 = vmatpush2.msra.mxu0 0.0
    %398 = vmatprep.subr.mxu0 0.0
    %399 = vmatpush2.msra.mxu0 0.0
    %400 = vmatprep.subr.mxu0 0.0
    %401 = vmatpush2.msra.mxu0 0.0
    %402 = vmatprep.subr.mxu0 0.0
    %403 = vmatpush2.msra.mxu0 0.0
    %404 = vmatprep.subr.mxu0 0.0
    %405 = vmatpush2.msra.mxu0 0.0
    %406 = vmatprep.subr.mxu0 0.0
    %407 = vmatpush2.msra.mxu0 0.0
    %408 = vmatprep.subr.mxu0 0.0
    %409 = vmatpush2.msra.mxu0 0.0
    %410 = vmatprep.subr.mxu0 0.0
    %411 = vmatpush2.msra.mxu0 0.0
    %412 = vmatprep.subr.mxu0 0.0
    %413 = vmatpush2.msra.mxu0 0.0
    %414 = vmatprep.subr.mxu0 0.0
    %415 = vmatpush2.msra.mxu0 0.0
    %416 = vmatprep.subr.mxu0 0.0
    %417 = vmatpush2.msra.mxu0 0.0
    %418 = vmatprep.subr.mxu0 0.0
    %419 = vmatpush2.msra.mxu0 0.0
    %420 = vmatprep.subr.mxu0 0.0
    %421 = vmatpush2.msra.mxu0 0.0
    %422 = vmatprep.mubr.f32.mxu0 0.0
    %423 = vmatmul.mubr.f32.gmra.mxu0 %v335
    %v424 = vpop.f32.mrf.mxu0
    %v425 = vadd.f32 %v357, %v424
    %v426 = vpop.f32.mrf.mxu0
    %427 = vdwg.mxu0
    %v428 = vlaneseq
    %v429 = vand.u32 %v428, 127
    %vm430 = vcmp.lt.s32.totalorder %v429, 8
    %v431 = vsel %vm430, %v425, -inf
    %432 = vmax.xlane.f32.xlu0 %v431
    %v433 = vpop.xlane.xlu0 %432
    %v434 = vsub.f32 %v431, %v433
    %v435 = vmul.f32 %v434, 1.442695
    %v436 = vpow.pop %v435
    %437 = vadd.xlane.f32.xlu0 %v436
    %v438 = vpop.xlane.xlu0 %437
    %v439 = vlog2.pop %v438
    %v440 = vmul.f32 %v439, 0.6931472
    %v441 = vadd.f32 %v433, %v440
    %v442 = vsub.f32 %v425, %v441
    %v443 = vmul.f32 %v442, 1000.0
    %v444 = vround.ne.pseudo %v443
    %v445 = vrcp.pop 1000.0
    %v446 = vmul.f32 %v444, %v445
    %vm447 = vcmp.eq.s32.totalorder %v429, 0
    %vm448 = vcmp.ge.f32.partialorder %v446, 0.5
    %vm449 = vmand %vm447, %vm448
    %vm450 = vcmp.le.f32.partialorder %v446, 1.0
    %vm451 = vmand %vm449, %vm450
    %v452 = vsel %vm451, 0.8, %v442
    %453 = vst [vmem:[#allocation8] sm:$0xff] %v452
    // Predicated region
    $region26: #{tpu_custom_call.1} parent=1 // pred_check
      _
    $region27: #{tpu_custom_call.1} parent=1 // pred_check_branch
      %455 = sbr.rel (0) target = $region29
    $region28: #{tpu_custom_call.1} parent=1 // pred_region
      %s457 = ssub.s32 128, 128
      %458 = vsyncadd [#allocation4], %s457
      %s460 = sshll.u32 [#allocation8], 4
      %s461 = int_to_ptr.vmem [resolvable:$true] %s460
      %463 = dma.vmem_to_hbm [thread:$0]  %s461, 128, %s3, [#allocation4]
    $region29: #{tpu_custom_call.1} parent=1 // pred_fallthru
      _
    // Predicated region
    $region30: #{tpu_custom_call.1} parent=1 // pred_check
      _
    $region31: #{tpu_custom_call.1} parent=1 // pred_check_branch
      %465 = sbr.rel (0) target = $region33
    $region32: #{tpu_custom_call.1} parent=1 // pred_region
      %466 = dma.done [#allocation4], 128
    $region33: #{tpu_custom_call.1} parent=1 // pred_fallthru
      _
    %467 = vsyncpa [#allocation3], 1
    %468 = vsyncpa [#allocation6], 1
    %469 = vsyncpa [#allocation4], 1

</llo_original>
